<compile_context>
chip_gen: v6e
topology: v6e:2x2x1
jax: 0.10.0
libtpu: 0.0.40
codegen_flags: <defaults>
</compile_context>

<pallas_src>
import functools

import numpy as np
import jax
import jax.numpy as jnp
from jax import lax
from jax.experimental import pallas as pl
from jax.experimental.pallas import tpu as pltpu

LANES = 128
MAX_SAMPLES = 128      # per-ray sample window; must bound samples/ray (see TODO)
R_TILE = 128           # rays processed per grid step
EW_BLOCK_ROWS = 1024   # fused elementwise tile rows: (1024,128) f32 = 512 KiB / buffer


# ----------------------------------------------------------------------------
# Fused elementwise losses (rgb / seg / opacity): one lane-dense pallas_call
# ----------------------------------------------------------------------------
def _fused_ew_kernel(a_ref, b_ref, tag_ref, o_ref, *, lambda_opacity):
    a = a_ref[...]
    b = b_ref[...]
    tag = tag_ref[...]
    rgb_v = (a - b) * (a - b)                       # (pred - target)^2
    seg_v = (a - 1.0) * (a - 1.0)                   # (seg - 1)^2
    o = a + 1e-10
    opa_v = lambda_opacity * (-o * jnp.log(o))      # lambda * (-o*log(o))
    out = jnp.where(tag == 2, opa_v, jnp.where(tag == 1, seg_v, rgb_v))
    o_ref[...] = out


def fused_elementwise_losses(rgb_pred, rgb_tgt, seg, opacity, lambda_opacity):
    """Single pallas_call for rgb/seg/opacity losses on one (rows,128) slab."""
    parts = [(rgb_pred, rgb_tgt, 0), (seg, None, 1), (opacity, None, 2)]
    a_list, b_list, t_list, sizes = [], [], [], []
    for x, y, tag in parts:
        xf = x.astype(jnp.float32).reshape(-1)
        n = xf.shape[0]
        a_list.append(xf)
        b_list.append(y.astype(jnp.float32).reshape(-1) if y is not None
                      else jnp.zeros((n,), jnp.float32))
        t_list.append(jnp.full((n,), tag, jnp.int32))
        sizes.append(n)

    a = jnp.concatenate(a_list)
    b = jnp.concatenate(b_list)
    tg = jnp.concatenate(t_list)
    n_all = a.shape[0]

    rows = max(1, -(-n_all // LANES))
    rows8 = -(-rows // 8) * 8                            # sublane-aligned rows
    block_rows = min(EW_BLOCK_ROWS, rows8)
    padded_rows = -(-rows8 // block_rows) * block_rows
    pad = padded_rows * LANES - n_all

    a = jnp.pad(a, (0, pad)).reshape(padded_rows, LANES)
    b = jnp.pad(b, (0, pad)).reshape(padded_rows, LANES)
    tg = jnp.pad(tg, (0, pad)).reshape(padded_rows, LANES)

    spec = pl.BlockSpec((block_rows, LANES), lambda i: (i, 0))
    out = pl.pallas_call(
        functools.partial(_fused_ew_kernel, lambda_opacity=float(lambda_opacity)),
        out_shape=jax.ShapeDtypeStruct((padded_rows, LANES), jnp.float32),
        grid=(padded_rows // block_rows,),
        in_specs=[spec, spec, spec],
        out_specs=spec,
        compiler_params=pltpu.CompilerParams(dimension_semantics=("parallel",)),
    )(a, b, tg)

    flat = out.reshape(-1)
    n1, n2, n3 = sizes
    rgb_out = flat[:n1].reshape(rgb_pred.shape).astype(rgb_pred.dtype)
    seg_out = flat[n1:n1 + n2].reshape(seg.shape).astype(seg.dtype)
    opa_out = flat[n1 + n2:n1 + n2 + n3].reshape(opacity.shape).astype(opacity.dtype)
    return rgb_out, seg_out, opa_out


# ----------------------------------------------------------------------------
# Distortion loss (Mip-NeRF-360), 128 rays / grid step, cross-step double buffer
# ----------------------------------------------------------------------------
def _distortion_kernel(starts_ref,              # SMEM (n_rays_pad,) int32 [prefetch]
                       tri_ref, cnt_ref,        # VMEM (S,S) f32, (R_TILE,1) int32
                       wdt_hbm,                 # HBM (3,1,N_pad) f32 (pl.ANY)
                       out_ref,                 # VMEM (1,1,R_TILE) f32
                       buf, sem,                # VMEM (2,3,R_TILE,S) f32, DMA sem (2,)
                       *, lambda_distortion, tiles_per_chunk):
    c = pl.program_id(0)                        # "parallel" chunk (megacore)
    i = pl.program_id(1)                        # "arbitrary" tile within chunk
    tile = c * tiles_per_chunk + i
    slot = lax.rem(i, 2)

    def issue(tile_idx, s):
        base = tile_idx * R_TILE

        @pl.loop(0, R_TILE)
        def _issue(r):
            s0 = starts_ref[base + r]
            # ONE descriptor per ray: all three channels (w, delta, t) at once.
            pltpu.make_async_copy(
                wdt_hbm.at[:, :, pl.ds(s0, MAX_SAMPLES)],    # (3,1,S) strided HBM read
                buf.at[s, :, pl.ds(r, 1), :],                # (3,1,S) into slot s, row r
                sem.at[s],
            ).start()

    # Prime this chunk's first tile (each TensorCore primes its own chunk).
    @pl.when(i == 0)
    def _prime():
        issue(tile, slot)

    # Prefetch the next tile of this chunk into the other slot; it lands while
    # this step's wait + compute run (cross-step latency hiding).
    @pl.when(i + 1 < tiles_per_chunk)
    def _prefetch():
        issue(tile + 1, 1 - slot)

    # DMA-independent prep while the current tile's copies land.
    cnt = cnt_ref[...]                                               # (R, 1) int32
    samp = lax.broadcasted_iota(jnp.int32, (R_TILE, MAX_SAMPLES), 1)
    valid = samp < cnt                                               # (R, S)

    # ONE aggregate wait: dst covers the whole slot buffer, so its byte count
    # equals the sum signalled by this tile's R_TILE per-ray copies.
    # (Relies on every per-ray copy being exactly 3*MAX_SAMPLES*4 bytes.)
    pltpu.make_async_copy(buf.at[1 - slot], buf.at[slot], sem.at[slot]).wait()

    w = jnp.where(valid, buf[slot, 0], 0.0)                          # (R, S)
    t = buf[slot, 2]                                                 # (R, S)
    tri = tri_ref[...]                                               # (S, S) upper-tri

    # Exclusive prefix sums via two back-to-back MXU matmuls (no concat; low liveness).
    w_excl = jnp.dot(w, tri, preferred_element_type=jnp.float32)     # sum_{j<i} w_j
    acc = t * w_excl
    wt = w * t
    wt_excl = jnp.dot(wt, tri, preferred_element_type=jnp.float32)   # sum_{j<i} w_j t_j
    acc = (2.0 * w) * (acc - wt_excl)                # 2*w_i*(t_i*Wexcl - WTexcl)
    delta = buf[slot, 1]                             # load late (liveness)
    acc = acc + (w * w) * (delta * (1.0 / 3.0))

    # Per-ray reduction straight onto lanes: (1,S).(R,S)^T -> (1,R) lane-dense row.
    ones_row = jnp.ones((1, MAX_SAMPLES), jnp.float32)
    loss_row = lax.dot_general(ones_row, acc, (((1,), (1,)), ((), ())),
                               preferred_element_type=jnp.float32)   # (1, R)
    out_ref[...] = (lambda_distortion * loss_row).reshape(1, 1, R_TILE)


def distortion_loss(ws, deltas, ts, rays_a, lambda_distortion):
    n_rays = rays_a.shape[0]
    n_tiles = -(-n_rays // R_TILE)
    n_chunks = 2 if n_tiles >= 2 else 1                 # v7x megacore sharding
    tiles_per_chunk = -(-n_tiles // n_chunks)
    n_tiles_pad = n_chunks * tiles_per_chunk
    n_rays_pad = n_tiles_pad * R_TILE

    rays_a = rays_a.astype(jnp.int32)
    ray_idx = rays_a[:, 0]
    starts = jnp.pad(rays_a[:, 1], (0, n_rays_pad - n_rays))        # padded rays: start 0
    # TODO(synk): rays with more than MAX_SAMPLES samples are truncated; raise
    # MAX_SAMPLES (256 also fills the 256-wide MXU on v6e/v7x) or add per-tile
    # sample chunking if the ray marcher emits longer rays.
    counts = jnp.minimum(rays_a[:, 2], MAX_SAMPLES)
    counts = jnp.pad(counts, (0, n_rays_pad - n_rays)).reshape(n_rays_pad, 1)

    def _flat_pad(x):
        # +MAX_SAMPLES pad keeps every per-ray over-read inside the array.
        return jnp.pad(x.astype(jnp.float32).reshape(-1), (0, MAX_SAMPLES))

    # Stack the three channels so one DMA per ray covers w, delta and t.
    wdt = jnp.stack([_flat_pad(ws), _flat_pad(deltas), _flat_pad(ts)], axis=0)
    wdt = wdt.reshape(3, 1, wdt.shape[-1])

    # Strictly-upper-triangular constant, resident across the whole grid.
    tri = jnp.triu(jnp.ones((MAX_SAMPLES, MAX_SAMPLES), jnp.float32), k=1)

    out = pl.pallas_call(
        functools.partial(_distortion_kernel,
                          lambda_distortion=float(lambda_distortion),
                          tiles_per_chunk=tiles_per_chunk),
        out_shape=jax.ShapeDtypeStruct((n_tiles_pad, 1, R_TILE), jnp.float32),
        grid_spec=pltpu.PrefetchScalarGridSpec(
            num_scalar_prefetch=1,                                   # starts (1-D SMEM)
            grid=(n_chunks, tiles_per_chunk),
            in_specs=[
                pl.BlockSpec((MAX_SAMPLES, MAX_SAMPLES), lambda c, i, s: (0, 0)),   # tri
                pl.BlockSpec((R_TILE, 1),
                             lambda c, i, s: (c * tiles_per_chunk + i, 0)),          # counts
                pl.BlockSpec(memory_space=pl.ANY),                                   # wdt (HBM)
            ],
            out_specs=pl.BlockSpec((1, 1, R_TILE),
                                   lambda c, i, s: (c * tiles_per_chunk + i, 0, 0)),
            scratch_shapes=[
                pltpu.VMEM((2, 3, R_TILE, MAX_SAMPLES), jnp.float32),   # double buffer
                pltpu.SemaphoreType.DMA((2,)),                          # one sem per slot
            ],
        ),
        compiler_params=pltpu.CompilerParams(
            dimension_semantics=("parallel", "arbitrary")),
    )(starts, tri, counts, wdt)

    per_ray = out.reshape(-1)[:n_rays]
    # Scatter to the ray index stored in rays_a[:, 0] (usually the identity).
    return jnp.zeros((n_rays,), jnp.float32).at[ray_idx].set(per_ray)


# ----------------------------------------------------------------------------
# NeRFLoss wrapper (no learnable parameters; lambdas are hyper-parameters)
# ----------------------------------------------------------------------------
class NeRFLossPallas:
    def __init__(self, lambda_opacity=1e-3, lambda_distortion=1e-3):
        self.lambda_opacity = float(lambda_opacity)
        self.lambda_distortion = float(lambda_distortion)

    def __call__(self, results, target, **kwargs):
        d = {}
        rgb, seg, opa = fused_elementwise_losses(
            results['rgb'], target['rgb'], results['seg'], results['opacity'],
            self.lambda_opacity)
        d['rgb'] = rgb
        d['seg'] = seg
        d['opacity'] = opa
        if self.lambda_distortion > 0:
            d['distortion'] = distortion_loss(
                results['ws'], results['deltas'], results['ts'], results['rays_a'],
                self.lambda_distortion)
        return d


# ----------------------------------------------------------------------------
# Pure NumPy reference (sanity check only)
# ----------------------------------------------------------------------------
def _ref_distortion(ws, deltas, ts, rays_a, lam):
    out = np.zeros(rays_a.shape[0], dtype=np.float32)
    ws, deltas, ts, rays_a = map(np.asarray, (ws, deltas, ts, rays_a))
    for r in range(rays_a.shape[0]):
        ridx, s, n = int(rays_a[r, 0]), int(rays_a[r, 1]), int(rays_a[r, 2])
        w, d, t = ws[s:s + n], deltas[s:s + n], ts[s:s + n]
        pair = np.sum(w[:, None] * w[None, :] * np.abs(t[:, None] - t[None, :]))
        uni = np.sum(w * w * d) / 3.0
        out[ridx] = lam * (pair + uni)
    return out


if __name__ == "__main__":
    key = jax.random.PRNGKey(0)
    ks = jax.random.split(key, 7)

    N_RAYS = 8
    counts = jnp.array([5, 9, 3, 12, 7, 1, 10, 4], dtype=jnp.int32)
    starts = jnp.concatenate(
        [jnp.zeros((1,), jnp.int32), jnp.cumsum(counts)[:-1].astype(jnp.int32)])
    rays_a = jnp.stack([jnp.arange(N_RAYS, dtype=jnp.int32), starts, counts], axis=1)
    n_total = int(counts.sum())

    results = {
        'rgb': jax.random.uniform(ks[0], (N_RAYS, 3), jnp.float32),
        'seg': jax.random.uniform(ks[1], (N_RAYS, 4), jnp.float32),
        'opacity': jax.random.uniform(ks[2], (N_RAYS,), jnp.float32,
                                      minval=0.05, maxval=0.95),
        'ws': jax.random.uniform(ks[3], (n_total,), jnp.float32),
        'deltas': jax.random.uniform(ks[4], (n_total,), jnp.float32) * 0.01 + 1e-3,
        'ts': jnp.cumsum(jax.random.uniform(ks[5], (n_total,), jnp.float32) * 0.1 + 1e-3),
        'rays_a': rays_a,
    }
    target = {'rgb': jax.random.uniform(ks[6], (N_RAYS, 3), jnp.float32)}

    loss_fn = NeRFLossPallas(lambda_opacity=1e-3, lambda_distortion=1e-3)
    d = loss_fn(results, target)
    d = jax.tree_util.tree_map(jax.block_until_ready, d)

    # Sanity checks against a pure NumPy reference.
    np.testing.assert_allclose(
        np.asarray(d['rgb']),
        np.asarray((results['rgb'] - target['rgb']) ** 2), rtol=1e-5, atol=1e-6)
    np.testing.assert_allclose(
        np.asarray(d['seg']),
        np.asarray((results['seg'] - 1.0) ** 2), rtol=1e-5, atol=1e-6)
    o = np.asarray(results['opacity']) + 1e-10
    np.testing.assert_allclose(
        np.asarray(d['opacity']), 1e-3 * (-o * np.log(o)), rtol=1e-5, atol=1e-7)
    np.testing.assert_allclose(
        np.asarray(d['distortion']),
        _ref_distortion(results['ws'], results['deltas'], results['ts'],
                        results['rays_a'], 1e-3),
        rtol=2e-3, atol=1e-6)

    print("KERNEL_OK")
</pallas_src>

<mosaic_0001>
module attributes {stable_mosaic.version = 11 : i64} {
  func.func @_fused_ew_kernel(%arg0: i32, %arg1: memref<8x128xf32, #tpu.memory_space<vmem>>, %arg2: memref<8x128xf32, #tpu.memory_space<vmem>>, %arg3: memref<8x128xi32, #tpu.memory_space<vmem>>, %arg4: memref<8x128xf32, #tpu.memory_space<vmem>>) attributes {dimension_semantics = [#tpu.dimension_semantics<parallel>], iteration_bounds = array<i64: 1>, scalar_prefetch = 0 : i64, scratch_operands = 0 : i64, tpu.core_type = #tpu.core_type<tc>, window_params = [{transform_indices = @transform_0, window_bounds = array<i64: 8, 128>}, {transform_indices = @transform_1, window_bounds = array<i64: 8, 128>}, {transform_indices = @transform_2, window_bounds = array<i64: 8, 128>}, {transform_indices = @transform_3, window_bounds = array<i64: 8, 128>}]} {
    %c0 = arith.constant 0 : index
    %c0_0 = arith.constant 0 : index
    %0 = vector.load %arg1[%c0, %c0_0] : memref<8x128xf32, #tpu.memory_space<vmem>>, vector<8x128xf32>
    %c0_1 = arith.constant 0 : index
    %c0_2 = arith.constant 0 : index
    %1 = vector.load %arg2[%c0_1, %c0_2] : memref<8x128xf32, #tpu.memory_space<vmem>>, vector<8x128xf32>
    %c0_3 = arith.constant 0 : index
    %c0_4 = arith.constant 0 : index
    %2 = vector.load %arg3[%c0_3, %c0_4] : memref<8x128xi32, #tpu.memory_space<vmem>>, vector<8x128xi32>
    %3 = arith.subf %0, %1 : vector<8x128xf32>
    %4 = arith.subf %0, %1 : vector<8x128xf32>
    %5 = arith.mulf %3, %4 : vector<8x128xf32>
    %cst = arith.constant 1.000000e+00 : f32
    %6 = vector.broadcast %cst : f32 to vector<8x128xf32>
    %7 = arith.subf %0, %6 : vector<8x128xf32>
    %cst_5 = arith.constant 1.000000e+00 : f32
    %8 = vector.broadcast %cst_5 : f32 to vector<8x128xf32>
    %9 = arith.subf %0, %8 : vector<8x128xf32>
    %10 = arith.mulf %7, %9 : vector<8x128xf32>
    %cst_6 = arith.constant 1.000000e-10 : f32
    %11 = vector.broadcast %cst_6 : f32 to vector<8x128xf32>
    %12 = arith.addf %0, %11 : vector<8x128xf32>
    %cst_7 = arith.constant 0.000000e+00 : f32
    %13 = vector.broadcast %cst_7 : f32 to vector<8x128xf32>
    %14 = arith.subf %13, %12 : vector<8x128xf32>
    %15 = math.log %12 : vector<8x128xf32>
    %16 = arith.mulf %14, %15 : vector<8x128xf32>
    %cst_8 = arith.constant 1.000000e-03 : f32
    %17 = vector.broadcast %cst_8 : f32 to vector<8x128xf32>
    %18 = arith.mulf %17, %16 : vector<8x128xf32>
    %c2_i32 = arith.constant 2 : i32
    %19 = vector.broadcast %c2_i32 : i32 to vector<8x128xi32>
    %20 = arith.cmpi eq, %2, %19 : vector<8x128xi32>
    %c1_i32 = arith.constant 1 : i32
    %21 = vector.broadcast %c1_i32 : i32 to vector<8x128xi32>
    %22 = arith.cmpi eq, %2, %21 : vector<8x128xi32>
    %23 = arith.select %22, %10, %5 : vector<8x128xi1>, vector<8x128xf32>
    %24 = arith.select %20, %18, %23 : vector<8x128xi1>, vector<8x128xf32>
    %c0_9 = arith.constant 0 : index
    %c0_10 = arith.constant 0 : index
    %25 = vector.load %arg4[%c0_9, %c0_10] : memref<8x128xf32, #tpu.memory_space<vmem>>, vector<8x128xf32>
    tpu.vector_store %arg4[%c0_9, %c0_10], %24 {strides = array<i32>} : memref<8x128xf32, #tpu.memory_space<vmem>>, vector<8x128xf32>,
    return
  }
  func.func @transform_0(%arg0: i32) -> (i32, i32) {
    %c0_i32 = arith.constant 0 : i32
    %c0_i32_0 = arith.constant 0 : i32
    return %arg0, %c0_i32 : i32, i32
  }
  func.func @transform_1(%arg0: i32) -> (i32, i32) {
    %c0_i32 = arith.constant 0 : i32
    %c0_i32_0 = arith.constant 0 : i32
    return %arg0, %c0_i32 : i32, i32
  }
  func.func @transform_2(%arg0: i32) -> (i32, i32) {
    %c0_i32 = arith.constant 0 : i32
    %c0_i32_0 = arith.constant 0 : i32
    return %arg0, %c0_i32 : i32, i32
  }
  func.func @transform_3(%arg0: i32) -> (i32, i32) {
    %c0_i32 = arith.constant 0 : i32
    %c0_i32_0 = arith.constant 0 : i32
    return %arg0, %c0_i32 : i32, i32
  }
}

</mosaic_0001>

<llo_original>
// kernel: tpu_custom_call.1
$region0: #{tpu_custom_call.1}
  #allocation0 [shape = 'u32[]', space=smem, size = 0x4, offset = 0x4, fixed_abs, tag = 'smem constant byte address 0x4 - core index']
  #allocation1 [shape = 'u32[144,128]{1,0:T(1,128)}', space=vmem, size = 0x12000, scoped, tag = 'internal scratch']
  %s0 = inlined_call_operand.hbm [shape: f32[8,128], index: 0, kind: input, shape index: {}]
  %s1 = inlined_call_operand.hbm [shape: f32[8,128], index: 1, kind: input, shape index: {}]
  %s2 = inlined_call_operand.hbm [shape: s32[8,128], index: 2, kind: input, shape index: {}]
  %s3 = inlined_call_operand.hbm [shape: f32[8,128], index: 3, kind: output, shape index: {}]
  %s4 = sld [smem:[#allocation0]]
  $region34: #{tpu_custom_call.1} parent=0
    _
  %s6 = ssub.s32 1, %s4
  %s7 = scalar_select 0, %s6, %s4
  $region1: #{tpu_custom_call.1} parent=0
    #allocation2 [shape = 'u8[4096]{0}', space=vmem, size = 0x1000, scoped, tag = 'input window, operand 0, single buffered']
    #allocation3 [shape = 's32[1]{0}', space=sflag, size = 0x4, scoped, tag = 'scoped memory for tpu_custom_call.1']
    #allocation4 [shape = 's32[1]{0}', space=sflag, size = 0x4, scoped, tag = 'scoped memory for tpu_custom_call.1']
    #allocation5 [shape = 'u8[4096]{0}', space=vmem, size = 0x1000, scoped, tag = 'input window, operand 1, single buffered']
    #allocation6 [shape = 's32[1]{0}', space=sflag, size = 0x4, scoped, tag = 'scoped memory for tpu_custom_call.1']
    #allocation7 [shape = 'u8[4096]{0}', space=vmem, size = 0x1000, scoped, tag = 'input window, operand 2, single buffered']
    #allocation8 [shape = 'u8[4096]{0}', space=vmem, size = 0x1000, scoped, tag = 'output window, operand 0, single buffered']
    %8 = vsyncpa [#allocation3], 0
    %9 = vsyncpa [#allocation6], 0
    %10 = vsyncpa [#allocation4], 0
    // Predicated region
    $region2: #{tpu_custom_call.1} parent=1 // pred_check
      _
    $region3: #{tpu_custom_call.1} parent=1 // pred_check_branch
      %12 = sbr.rel (0) target = $region5
    $region4: #{tpu_custom_call.1} parent=1 // pred_region
      %s14 = ssub.s32 128, 128
      %15 = vsyncadd [#allocation3], %s14
      %s17 = sshll.u32 [#allocation2], 4
      %s18 = int_to_ptr.vmem [resolvable:$true] %s17
      %20 = dma.hbm_to_vmem [thread:$0]  %s0, 128, %s18, [#allocation3]
    $region5: #{tpu_custom_call.1} parent=1 // pred_fallthru
      _
    // Predicated region
    $region6: #{tpu_custom_call.1} parent=1 // pred_check
      _
    $region7: #{tpu_custom_call.1} parent=1 // pred_check_branch
      %22 = sbr.rel (0) target = $region9
    $region8: #{tpu_custom_call.1} parent=1 // pred_region
      %s24 = ssub.s32 128, 128
      %25 = vsyncadd [#allocation6], %s24
      %s27 = sshll.u32 [#allocation5], 4
      %s28 = int_to_ptr.vmem [resolvable:$true] %s27
      %30 = dma.hbm_to_vmem [thread:$0]  %s1, 128, %s28, [#allocation6]
    $region9: #{tpu_custom_call.1} parent=1 // pred_fallthru
      _
    // Predicated region
    $region10: #{tpu_custom_call.1} parent=1 // pred_check
      _
    $region11: #{tpu_custom_call.1} parent=1 // pred_check_branch
      %32 = sbr.rel (0) target = $region13
    $region12: #{tpu_custom_call.1} parent=1 // pred_region
      %s34 = ssub.s32 128, 128
      %35 = vsyncadd [#allocation6], %s34
      %s37 = sshll.u32 [#allocation7], 4
      %s38 = int_to_ptr.vmem [resolvable:$true] %s37
      %40 = dma.hbm_to_vmem [thread:$0]  %s2, 128, %s38, [#allocation6]
    $region13: #{tpu_custom_call.1} parent=1 // pred_fallthru
      _
    // Predicated region
    $region14: #{tpu_custom_call.1} parent=1 // pred_check
      _
    $region15: #{tpu_custom_call.1} parent=1 // pred_check_branch
      %42 = sbr.rel (0) target = $region17
    $region16: #{tpu_custom_call.1} parent=1 // pred_region
      %43 = dma.done [#allocation3], 128
    $region17: #{tpu_custom_call.1} parent=1 // pred_fallthru
      _
    // Predicated region
    $region18: #{tpu_custom_call.1} parent=1 // pred_check
      _
    $region19: #{tpu_custom_call.1} parent=1 // pred_check_branch
      %45 = sbr.rel (0) target = $region21
    $region20: #{tpu_custom_call.1} parent=1 // pred_region
      %46 = dma.done [#allocation6], 128
    $region21: #{tpu_custom_call.1} parent=1 // pred_fallthru
      _
    // Predicated region
    $region22: #{tpu_custom_call.1} parent=1 // pred_check
      _
    $region23: #{tpu_custom_call.1} parent=1 // pred_check_branch
      %48 = sbr.rel (0) target = $region25
    $region24: #{tpu_custom_call.1} parent=1 // pred_region
      %49 = dma.done [#allocation6], 128
    $region25: #{tpu_custom_call.1} parent=1 // pred_fallthru
      _
    %v50 = vld [vmem:[#allocation2] sm:$0xff]
    %v51 = vld [vmem:[#allocation5] sm:$0xff]
    %v52 = vld [vmem:[#allocation7] sm:$0xff]
    %v53 = vsub.f32 %v50, %v51
    %v54 = vmul.f32 %v53, %v53
    %v55 = vsub.f32 %v50, 1.0
    %v56 = vmul.f32 %v55, %v55
    %v57 = vadd.f32 %v50, 1e-10
    %v58 = vsub.f32 0.0, %v57
    %v59 = vlog2.pop %v57
    %v60 = vmul.f32 %v59, 0.6931472
    %v61 = vmul.f32 %v58, %v60
    %v62 = vmul.f32 %v61, 0.001
    %vm63 = vcmp.eq.s32.totalorder %v52, 2
    %vm64 = vcmp.eq.s32.totalorder %v52, 1
    %v65 = vsel %vm64, %v56, %v54
    %v66 = vsel %vm63, %v62, %v65
    %67 = vst [vmem:[#allocation8] sm:$0xff] %v66
    // Predicated region
    $region26: #{tpu_custom_call.1} parent=1 // pred_check
      _
    $region27: #{tpu_custom_call.1} parent=1 // pred_check_branch
      %69 = sbr.rel (0) target = $region29
    $region28: #{tpu_custom_call.1} parent=1 // pred_region
      %s71 = ssub.s32 128, 128
      %72 = vsyncadd [#allocation4], %s71
      %s74 = sshll.u32 [#allocation8], 4
      %s75 = int_to_ptr.vmem [resolvable:$true] %s74
      %77 = dma.vmem_to_hbm [thread:$0]  %s75, 128, %s3, [#allocation4]
    $region29: #{tpu_custom_call.1} parent=1 // pred_fallthru
      _
    // Predicated region
    $region30: #{tpu_custom_call.1} parent=1 // pred_check
      _
    $region31: #{tpu_custom_call.1} parent=1 // pred_check_branch
      %79 = sbr.rel (0) target = $region33
    $region32: #{tpu_custom_call.1} parent=1 // pred_region
      %80 = dma.done [#allocation4], 128
    $region33: #{tpu_custom_call.1} parent=1 // pred_fallthru
      _
    %81 = vsyncpa [#allocation3], 1
    %82 = vsyncpa [#allocation6], 1
    %83 = vsyncpa [#allocation4], 1

</llo_original>
